<compile_context>
chip_gen: v5e
topology: v5e:2x2
jax: 0.10.0
libtpu: 0.0.40
codegen_flags: <defaults>
</compile_context>

<pallas_src>
import numpy as np
import jax
import jax.numpy as jnp
from jax.experimental import pallas as pl
from jax.experimental.pallas import tpu as pltpu


def _round_up(x, m):
    return ((x + m - 1) // m) * m


def _cdiv(a, b):
    return -(-a // b)


# Working-set budget for the two double-buffered pair operands (bytes).
_VMEM_WORKING_SET_BYTES = 48 * 1024 * 1024


def _choose_tiles(batch, lanes, itemsize, batch_tile):
    """Pick (tile_rows, num_tiles, padded_batch) with balanced tiles."""
    num_tiles = max(1, _cdiv(batch, batch_tile))
    # v7x megacore: keep at least 2 tiles so both TensorCores get work.
    if num_tiles == 1 and batch >= 16:
        num_tiles = 2
    while True:
        tile_rows = _round_up(_cdiv(batch, num_tiles), 8)
        # 2 operands x 2 pipeline buffers each.
        if tile_rows <= 8 or 4 * tile_rows * lanes * itemsize <= _VMEM_WORKING_SET_BYTES:
            break
        num_tiles += 1
    return tile_rows, num_tiles, tile_rows * num_tiles


# ----------------------------- Pallas kernel --------------------------------

def ffm_kernel(a_ref, b_ref, lin_ref, out_ref):
    """a_ref, b_ref : (TB, L) pair-operand tiles (bf16 fast path / f32 exact).
       lin_ref      : (1, 1, TB) f32 pre-reduced linear term + bias.
       out_ref      : (1, 1, TB) f32 lane-dense sigmoid output row."""
    # Multiply in the operands' native dtype (bf16 VALU on v6e/v7x, f32 on
    # v5e / exact path); accumulate the cross-lane reduce in f32.
    prod = a_ref[...] * b_ref[...]
    ffm_sum = jnp.sum(prod, axis=-1, dtype=jnp.float32)          # (TB,)
    z = ffm_sum + lin_ref[0, 0, :]
    out_ref[0, 0, :] = jax.nn.sigmoid(z)


def ffm_pallas(a_op, b_op, lin_row, tile_rows):
    """a_op, b_op : (Bp, L) pair-operand matrices (bf16 or f32).
       lin_row    : (num_tiles, 1, tile_rows) f32  (linear term + bias).
       returns    : (Bp,) f32  sigmoid(linear + ffm)."""
    bp, lanes = a_op.shape
    num_tiles = bp // tile_rows
    itemsize = jnp.dtype(a_op.dtype).itemsize

    working_set = 2 * 2 * tile_rows * lanes * itemsize           # dbl-buffered
    vmem_limit = int(min(max(working_set + (4 << 20), 32 << 20), 56 << 20))

    cost = pl.CostEstimate(
        flops=2 * bp * lanes,
        transcendentals=bp,
        bytes_accessed=2 * bp * lanes * itemsize + 2 * bp * 4)

    out = pl.pallas_call(
        ffm_kernel,
        out_shape=jax.ShapeDtypeStruct((num_tiles, 1, tile_rows), jnp.float32),
        grid=(num_tiles,),
        in_specs=[
            pl.BlockSpec((tile_rows, lanes), lambda i: (i, 0)),
            pl.BlockSpec((tile_rows, lanes), lambda i: (i, 0)),
            pl.BlockSpec((1, 1, tile_rows), lambda i: (i, 0, 0)),
        ],
        out_specs=pl.BlockSpec((1, 1, tile_rows), lambda i: (i, 0, 0)),
        compiler_params=pltpu.CompilerParams(
            dimension_semantics=("parallel",),
            vmem_limit_bytes=vmem_limit),
        cost_estimate=cost,
    )(a_op, b_op, lin_row)
    return out.reshape(bp)


# ------------------------------ FFM module glue ------------------------------

class FFMPallas:
    def __init__(self, n_pages, cache_size, history_size, emb_size,
                 n_deltas, delta_emb_size, key,
                 batch_tile=4096, compute_dtype=jnp.bfloat16):
        self.emb_size = emb_size
        self.n_deltas = n_deltas
        self.delta_emb_size = delta_emb_size
        self.batch_tile = batch_tile
        self.compute_dtype = compute_dtype

        if delta_emb_size > 0 and n_deltas > 0:
            field_dims = [n_pages, n_deltas, n_pages, n_deltas]
            field_dims += [n_pages] * history_size + [n_deltas] * history_size
        else:
            field_dims = [n_pages] * (history_size + 2)
        self.field_dims = field_dims
        self.num_fields = len(field_dims)
        vocab = int(np.sum(field_dims))

        k1, k2 = jax.random.split(key)
        # One embedding table per field (torch: ModuleList of nn.Embedding).
        self.ffm_emb = (jax.random.normal(
            k1, (self.num_fields, vocab, emb_size), jnp.float32) * 0.1)
        # Linear feature embedding (output_dim=1) + bias (zero-init in torch).
        self.lin_emb = (jax.random.normal(k2, (vocab, 1), jnp.float32) * 0.1)
        self.bias = jnp.zeros((1, 1), jnp.float32)
        self.offsets = jnp.asarray(
            np.array((0, *np.cumsum(field_dims)[:-1]), dtype=np.int32))

        # Static pair index lists (i < j), matching torch's double loop order.
        ii, jj = np.triu_indices(self.num_fields, k=1)
        self.pair_i = jnp.asarray(ii, dtype=jnp.int32)
        self.pair_j = jnp.asarray(jj, dtype=jnp.int32)

        # jit so gather -> cast -> layout fuses with the pallas_call.
        self._forward = jax.jit(self._forward_impl,
                                static_argnames=("compute_dtype",))

    def _assemble_x(self, a, delta_a, b, delta_b, history, delta_history):
        a = jnp.atleast_1d(a)[:, None]                # unsqueeze(1)
        b = jnp.atleast_1d(b)[:, None]
        history = jnp.atleast_2d(history)
        if self.delta_emb_size > 0 and self.n_deltas > 0:
            delta_a = jnp.atleast_1d(delta_a)[:, None]
            delta_b = jnp.atleast_1d(delta_b)[:, None]
            delta_history = jnp.atleast_2d(delta_history)
            x = jnp.concatenate(
                [a, delta_a, b, delta_b, history, delta_history], axis=1)
        else:
            x = jnp.concatenate([a, b, history], axis=1)
        return x.astype(jnp.int32) + self.offsets[None, :]        # (B, F)

    def _forward_impl(self, a, delta_a, b, delta_b, history, delta_history,
                      *, compute_dtype):
        x = self._assemble_x(a, delta_a, b, delta_b, history, delta_history)
        batch, nf = x.shape
        npairs = int(self.pair_i.shape[0])
        lanes = npairs * self.emb_size

        itemsize = jnp.dtype(compute_dtype).itemsize
        tile_rows, num_tiles, padded = _choose_tiles(
            batch, lanes, itemsize, self.batch_tile)

        # Pad the tiny int index array (padded rows gather valid index 0 and
        # their results are sliced off below) instead of padding the big slabs.
        if padded != batch:
            x = jnp.concatenate(
                [x, jnp.zeros((padded - batch, nf), x.dtype)], axis=0)

        # Direct pair-operand gathers, reshaped straight into the kernel
        # layout (no (F, B, F, E) intermediate, no concatenate/pad passes):
        #   A [r, p] = E_{pair_i[p]}( x[r, pair_j[p]] )
        #   Bm[r, p] = E_{pair_j[p]}( x[r, pair_i[p]] )
        a_op = self.ffm_emb[self.pair_i[None, :], x[:, self.pair_j], :]
        b_op = self.ffm_emb[self.pair_j[None, :], x[:, self.pair_i], :]
        a_op = a_op.reshape(padded, lanes).astype(compute_dtype)
        b_op = b_op.reshape(padded, lanes).astype(compute_dtype)

        # Linear term + bias, pre-reduced in exact f32, laid out lane-dense
        # to match the kernel's output row.
        lin = jnp.sum(self.lin_emb[x, 0], axis=1) + self.bias[0, 0]  # (padded,)
        lin = lin.reshape(num_tiles, 1, tile_rows)

        out = ffm_pallas(a_op, b_op, lin, tile_rows)                 # (padded,)
        return out[:batch]

    def __call__(self, a, delta_a, b, delta_b, history, delta_history,
                 compute_dtype=None):
        cd = self.compute_dtype if compute_dtype is None else compute_dtype
        return self._forward(a, delta_a, b, delta_b, history, delta_history,
                             compute_dtype=cd)

    # Pure-JAX f32 reference for self-check.
    def reference(self, a, delta_a, b, delta_b, history, delta_history):
        x = self._assemble_x(a, delta_a, b, delta_b, history, delta_history)
        xs = self.ffm_emb[:, x, :]                                   # (F,B,F,E)
        F = self.num_fields
        terms = []
        for i in range(F - 1):
            for j in range(i + 1, F):
                terms.append(jnp.sum(xs[j, :, i, :] * xs[i, :, j, :], axis=-1))
        ffm_term = jnp.sum(jnp.stack(terms, axis=1), axis=1, keepdims=True)
        lin = jnp.sum(self.lin_emb[x, 0], axis=1, keepdims=True) + self.bias[0]
        return jax.nn.sigmoid((lin + ffm_term)[:, 0])


# ----------------------------------- main ------------------------------------

if __name__ == "__main__":
    key = jax.random.PRNGKey(0)
    k_param, k_a, k_da, k_b, k_db, k_h, k_dh = jax.random.split(key, 7)

    # Small synthetic config.
    n_pages, cache_size, history_size = 32, 8, 4
    emb_size, n_deltas, delta_emb_size = 8, 16, 4
    batch = 2

    model = FFMPallas(n_pages, cache_size, history_size, emb_size,
                      n_deltas, delta_emb_size, k_param)

    a = jax.random.randint(k_a, (batch,), 0, n_pages, dtype=jnp.int32)
    delta_a = jax.random.randint(k_da, (batch,), 0, n_deltas, dtype=jnp.int32)
    b = jax.random.randint(k_b, (batch,), 0, n_pages, dtype=jnp.int32)
    delta_b = jax.random.randint(k_db, (batch,), 0, n_deltas, dtype=jnp.int32)
    history = jax.random.randint(k_h, (batch, history_size), 0, n_pages,
                                 dtype=jnp.int32)
    delta_history = jax.random.randint(k_dh, (batch, history_size), 0, n_deltas,
                                       dtype=jnp.int32)

    ref = model.reference(a, delta_a, b, delta_b, history, delta_history)

    # Exact-precision path (f32 operands) -> tight tolerance vs. reference.
    out_f32 = model(a, delta_a, b, delta_b, history, delta_history,
                    compute_dtype=jnp.float32)
    out_f32 = jax.block_until_ready(out_f32)
    np.testing.assert_allclose(np.asarray(out_f32), np.asarray(ref),
                               rtol=1e-5, atol=1e-5)

    # Default fast path (bf16 multiply, f32 accumulate in-kernel) -> bf16-level
    # tolerance on the sigmoid output.
    out_bf16 = model(a, delta_a, b, delta_b, history, delta_history)
    out_bf16 = jax.block_until_ready(out_bf16)
    np.testing.assert_allclose(np.asarray(out_bf16), np.asarray(ref),
                               rtol=5e-2, atol=5e-3)

    print("KERNEL_OK")
</pallas_src>

<mosaic_0001>
module attributes {stable_mosaic.version = 11 : i64} {
  func.func @ffm_kernel(%arg0: i32, %arg1: memref<8x528xf32, #tpu.memory_space<vmem>>, %arg2: memref<8x528xf32, #tpu.memory_space<vmem>>, %arg3: memref<1x1x8xf32, #tpu.memory_space<vmem>>, %arg4: memref<1x1x8xf32, #tpu.memory_space<vmem>>) attributes {dimension_semantics = [#tpu.dimension_semantics<parallel>], iteration_bounds = array<i64: 1>, scalar_prefetch = 0 : i64, scratch_operands = 0 : i64, tpu.core_type = #tpu.core_type<tc>, window_params = [{transform_indices = @transform_0, window_bounds = array<i64: 8, 528>}, {transform_indices = @transform_1, window_bounds = array<i64: 8, 528>}, {transform_indices = @transform_2, window_bounds = array<i64: 1, 1, 8>}, {transform_indices = @transform_3, window_bounds = array<i64: 1, 1, 8>}]} {
    %c0 = arith.constant 0 : index
    %c0_0 = arith.constant 0 : index
    %0 = vector.load %arg1[%c0, %c0_0] : memref<8x528xf32, #tpu.memory_space<vmem>>, vector<8x528xf32>
    %c0_1 = arith.constant 0 : index
    %c0_2 = arith.constant 0 : index
    %1 = vector.load %arg2[%c0_1, %c0_2] : memref<8x528xf32, #tpu.memory_space<vmem>>, vector<8x528xf32>
    %2 = arith.mulf %0, %1 : vector<8x528xf32>
    %cst = arith.constant dense<0.000000e+00> : vector<8xf32>
    %3 = vector.multi_reduction <add>, %2, %cst [1] : vector<8x528xf32> to vector<8xf32>
    %c0_3 = arith.constant 0 : index
    %c0_4 = arith.constant 0 : index
    %c0_5 = arith.constant 0 : index
    %4 = vector.load %arg3[%c0_3, %c0_4, %c0_5] : memref<1x1x8xf32, #tpu.memory_space<vmem>>, vector<1x1x8xf32>
    %5 = vector.shape_cast %4 : vector<1x1x8xf32> to vector<8xf32>
    %6 = arith.addf %3, %5 : vector<8xf32>
    %7 = arith.negf %6 : vector<8xf32>
    %8 = math.exp %7 : vector<8xf32>
    %cst_6 = arith.constant 1.000000e+00 : f32
    %9 = vector.broadcast %cst_6 : f32 to vector<8xf32>
    %10 = arith.addf %9, %8 : vector<8xf32>
    %11 = arith.divf %9, %10 : vector<8xf32>
    %c0_7 = arith.constant 0 : index
    %c0_8 = arith.constant 0 : index
    %c0_9 = arith.constant 0 : index
    %12 = vector.load %arg4[%c0_7, %c0_8, %c0_9] : memref<1x1x8xf32, #tpu.memory_space<vmem>>, vector<1x1x8xf32>
    %13 = vector.shape_cast %12 : vector<1x1x8xf32> to vector<8xf32>
    %14 = vector.shape_cast %11 : vector<8xf32> to vector<1x1x8xf32>
    tpu.vector_store %arg4[%c0_7, %c0_8, %c0_9], %14 {strides = array<i32>} : memref<1x1x8xf32, #tpu.memory_space<vmem>>, vector<1x1x8xf32>,
    return
  }
  func.func @transform_0(%arg0: i32) -> (i32, i32) {
    %c0_i32 = arith.constant 0 : i32
    %c0_i32_0 = arith.constant 0 : i32
    return %arg0, %c0_i32 : i32, i32
  }
  func.func @transform_1(%arg0: i32) -> (i32, i32) {
    %c0_i32 = arith.constant 0 : i32
    %c0_i32_0 = arith.constant 0 : i32
    return %arg0, %c0_i32 : i32, i32
  }
  func.func @transform_2(%arg0: i32) -> (i32, i32, i32) {
    %c0_i32 = arith.constant 0 : i32
    %c0_i32_0 = arith.constant 0 : i32
    %c0_i32_1 = arith.constant 0 : i32
    return %arg0, %c0_i32, %c0_i32_0 : i32, i32, i32
  }
  func.func @transform_3(%arg0: i32) -> (i32, i32, i32) {
    %c0_i32 = arith.constant 0 : i32
    %c0_i32_0 = arith.constant 0 : i32
    %c0_i32_1 = arith.constant 0 : i32
    return %arg0, %c0_i32, %c0_i32_0 : i32, i32, i32
  }
}

</mosaic_0001>

<llo_original>
// kernel: _forward_impl.1
$region0: #{_forward_impl.1}
  #allocation0 [shape = 'u32[]', space=smem, size = 0x4, offset = 0x4, fixed_abs, tag = 'smem constant byte address 0x4 - core index']
  #allocation1 [shape = 'u32[72,128]{1,0:T(1,128)}', space=vmem, size = 0x9000, scoped, tag = 'internal scratch']
  %s0 = inlined_call_operand.vmem [shape: f32[8,528], index: 0, kind: input, shape index: {}]
  %s1 = inlined_call_operand.vmem [shape: f32[8,528], index: 1, kind: input, shape index: {}]
  %s2 = inlined_call_operand.vmem [shape: f32[1,1,8], index: 2, kind: input, shape index: {}]
  %s3 = inlined_call_operand.vmem [shape: f32[1,1,8], index: 3, kind: output, shape index: {}]
  %s4 = sld [smem:[#allocation0]]
  $region22: #{_forward_impl.1} parent=0
    _
  %s6 = ssub.s32 1, %s4
  %s7 = scalar_select 0, %s6, %s4
  // Predicated region
  $region2: #{_forward_impl.1} parent=0 // pred_check
    _
  $region3: #{_forward_impl.1} parent=0 // pred_check_branch
    %9 = sbr.rel (0) target = $region5
  $region4: #{_forward_impl.1} parent=0 // pred_region
    _
  $region5: #{_forward_impl.1} parent=0 // pred_fallthru
    _
  // Predicated region
  $region6: #{_forward_impl.1} parent=0 // pred_check
    _
  $region7: #{_forward_impl.1} parent=0 // pred_check_branch
    %11 = sbr.rel (0) target = $region9
  $region8: #{_forward_impl.1} parent=0 // pred_region
    _
  $region9: #{_forward_impl.1} parent=0 // pred_fallthru
    _
  // Predicated region
  $region10: #{_forward_impl.1} parent=0 // pred_check
    _
  $region11: #{_forward_impl.1} parent=0 // pred_check_branch
    %13 = sbr.rel (0) target = $region13
  $region12: #{_forward_impl.1} parent=0 // pred_region
    _
  $region13: #{_forward_impl.1} parent=0 // pred_fallthru
    _
  %v14 = vld [vmem:[%s0] sm:$0xff]
  %v15 = vld [vmem:[%s0 + $0x8] sm:$0xff]
  %v16 = vld [vmem:[%s0 + $0x10] sm:$0xff]
  %v17 = vld [vmem:[%s0 + $0x18] sm:$0xff]
  %v18 = vld [vmem:[%s0 + $0x20] sm:$0xff]
  %v19 = vld [vmem:[%s1] sm:$0xff]
  %v20 = vld [vmem:[%s1 + $0x8] sm:$0xff]
  %v21 = vld [vmem:[%s1 + $0x10] sm:$0xff]
  %v22 = vld [vmem:[%s1 + $0x18] sm:$0xff]
  %v23 = vld [vmem:[%s1 + $0x20] sm:$0xff]
  %v24 = vmul.f32 %v14, %v19
  %v25 = vmul.f32 %v15, %v20
  %v26 = vmul.f32 %v16, %v21
  %v27 = vmul.f32 %v17, %v22
  %v28 = vmul.f32 %v18, %v23
  %v29 = vadd.f32 %v24, %v25
  %v30 = vadd.f32 %v29, %v26
  %v31 = vadd.f32 %v30, %v27
  %vm32 = vcmask 130048
  %v33 = vsel %vm32, %v28, 0.0
  %v34 = vadd.f32 %v31, %v33
  %35 = vadd.xlane.f32.xlu0 %v34
  %v36 = vpop.xlane.xlu0 %35
  %v37 = vld [vmem:[%s2] sm:$0x1]
  %v39 = vperm.slane %v37, 0
  %v40 = vlaneseq
  %v41 = vshrl.u32 %v40, 7
  %43 = vset.pattern.permute.xlu0 %v41
  %44 = vperm.xlu0 %43, %v39
  %v45 = vpop.permute.xlu0 %44
  %v47 = vadd.f32 %v36, %v45
  %v48 = vxor.u32 %v47, 2147483648
  %v49 = vmul.f32 %v48, 1.442695
  %v50 = vpow.pop %v49
  %v51 = vadd.f32 %v50, 1.0
  %v52 = vrcp.pop %v51
  %v53 = vmul.f32 %v51, %v52
  %v54 = vsub.f32 1.0, %v53
  %v55 = vmul.f32 %v52, %v54
  %v56 = vadd.f32 %v52, %v55
  %vm57 = vweird.f32 %v51
  %vm58 = vweird.f32 %v52
  %vm59 = vmor %vm57, %vm58
  %v60 = vsel %vm59, %v52, %v56
  %v61 = vand.u32 2147483647, %v51
  %vm62 = vcmp.eq.f32.partialorder %v61, 8.507059e+37
  %v63 = vand.u32 %v51, 2147483648
  %v64 = vor.u32 1.1754944e-38, %v63
  %v65 = vsel %vm62, %v64, %v60
  %v66 = vmul.f32 1.0, %v65
  %68 = vset.pattern.permute.xlu0 0
  %69 = vperm.xlu0 %68, %v66
  %v70 = vpop.permute.xlu0 %69
  %v71 = vlaneseq
  %v72 = vand.u32 %v71, 127
  %v73 = vperm.slane %v70, %v72
  %vm75 = vcmask 57344
  %76 = vst.msk [vmem:[%s3] sm:$0x1] %vm75, %v73
  // Predicated region
  $region14: #{_forward_impl.1} parent=0 // pred_check
    _
  $region15: #{_forward_impl.1} parent=0 // pred_check_branch
    %78 = sbr.rel (0) target = $region17
  $region16: #{_forward_impl.1} parent=0 // pred_region
    _
  $region17: #{_forward_impl.1} parent=0 // pred_fallthru
    _
  // Predicated region
  $region18: #{_forward_impl.1} parent=0 // pred_check
    _
  $region19: #{_forward_impl.1} parent=0 // pred_check_branch
    %80 = sbr.rel (0) target = $region21
  $region20: #{_forward_impl.1} parent=0 // pred_region
    _
  $region21: #{_forward_impl.1} parent=0 // pred_fallthru
    _

</llo_original>
